<compile_context>
chip_gen: v5e
topology: v5e:2x2
jax: 0.10.0
libtpu: 0.0.40
codegen_flags: <defaults>
</compile_context>

<pallas_src>
import math

import jax
import jax.numpy as jnp
from jax.experimental import pallas as pl
from jax.experimental.pallas import tpu as pltpu

_LANE = 128
_MAX_VPU_K = 32    # contractions up to this size use unrolled VPU FMAs
_MAX_TB = 8192     # max batch tile (lanes); (2+2+8+8)*8192*4B ~= 640 KiB VMEM


def _round_up(n, m):
    return ((n + m - 1) // m) * m


def _dense_t(w_ref, b_ref, x):
    """y = W @ x + b in feature-major layout.

    w_ref: (N, K) weight, b_ref: (N, 1) bias, x: (K, tb) activations.
    Returns (N, tb).  For tiny K this is an unrolled chain of broadcast FMAs
    on the VPU (all operands lane-dense); large K falls back to the MXU.
    """
    n_out, k_dim = w_ref.shape
    w = w_ref[...]
    if k_dim <= _MAX_VPU_K:
        out = w[:, 0:1] * x[0:1, :]              # (N,1)*(1,tb) -> (N,tb)
        for k in range(1, k_dim):                # unrolled at trace time
            out = out + w[:, k:k + 1] * x[k:k + 1, :]
    else:
        out = jnp.dot(w, x, preferred_element_type=jnp.float32)
    return out + b_ref[...]


def _mlp_kernel(xT_ref, w1_ref, b1_ref, w2_ref, b2_ref, w3_ref, b3_ref,
                oT_ref):
    xT = xT_ref[...].astype(jnp.float32)                       # (F,  tb)
    h1 = jnp.maximum(_dense_t(w1_ref, b1_ref, xT), 0.0)        # (H,  tb)
    h2 = jnp.maximum(_dense_t(w2_ref, b2_ref, h1), 0.0)        # (H,  tb)
    oT_ref[...] = _dense_t(w3_ref, b3_ref, h2).astype(oT_ref.dtype)  # (O, tb)


def moon_net_forward(x, params, *, block_batch=None):
    """Fused MoonNet forward.

    x:      (B, in_features) float32
    params: dict with w1 (H,F), b1 (H,1), w2 (H,H), b2 (H,1),
            w3 (O,H), b3 (O,1)   -- PyTorch (out, in) weight layout.
    Returns (B, O) logits (lazy; caller may block_until_ready).
    """
    w1, b1 = params["w1"], params["b1"]
    w2, b2 = params["w2"], params["b2"]
    w3, b3 = params["w3"], params["b3"]

    B, F = x.shape
    H1 = w1.shape[0]
    H2 = w2.shape[0]
    O = w3.shape[0]

    # ---- batch tile: multiple of 128 (lane axis in feature-major layout) ---
    if block_batch is None:
        if B <= _MAX_TB:
            # Single grid step: optimal on 1-TC v5e/v6e; small batches are
            # launch-overhead dominated anyway.
            tb = _round_up(max(B, 1), _LANE)
        else:
            # Large batch: >= 4 grid steps so v7x's 2 TensorCores each get
            # >= 2 pipelined iterations; capped so blocks stay tiny.
            tb = min(_MAX_TB, _round_up(pl.cdiv(B, 4), _LANE))
    else:
        tb = _round_up(max(int(block_batch), _LANE), _LANE)

    B_pad = _round_up(B, tb)

    # Feature-major input: (F, B_pad), zero-padded batch columns (sliced away
    # after the kernel, so the garbage rows relu(b) they produce are harmless).
    xT = x.T
    if B_pad != B:
        xT = jnp.pad(xT, ((0, 0), (0, B_pad - B)))

    grid = (B_pad // tb,)

    def invariant(shape):
        # Grid-invariant operand (constant index_map -> no per-step re-fetch).
        return pl.BlockSpec(shape, lambda i: (0,) * len(shape))

    n_param = (w1.size + b1.size + w2.size + b2.size + w3.size + b3.size)
    cost = pl.CostEstimate(
        flops=2 * B_pad * (F * H1 + H1 * H2 + H2 * O),
        transcendentals=0,
        bytes_accessed=4 * (B_pad * F + B_pad * O + n_param),
    )

    outT = pl.pallas_call(
        _mlp_kernel,
        out_shape=jax.ShapeDtypeStruct((O, B_pad), x.dtype),
        grid_spec=pltpu.PrefetchScalarGridSpec(
            num_scalar_prefetch=0,
            grid=grid,
            in_specs=[
                pl.BlockSpec((F, tb), lambda i: (0, i)),   # x^T batch tile
                invariant(w1.shape), invariant(b1.shape),
                invariant(w2.shape), invariant(b2.shape),
                invariant(w3.shape), invariant(b3.shape),
            ],
            out_specs=pl.BlockSpec((O, tb), lambda i: (0, i)),
        ),
        compiler_params=pltpu.CompilerParams(
            dimension_semantics=("parallel",)),
        cost_estimate=cost,
    )(xT, w1, b1, w2, b2, w3, b3)

    return outT[:, :B].T   # (B, O); lazy


def init_moon_net_params(key, input_features, output_features, hidden_units=8):
    """PyTorch nn.Linear default init: U(-1/sqrt(fan_in), 1/sqrt(fan_in)) for
    both weight and bias.  Weights stored PyTorch-style (out, in); biases as
    (out, 1) columns for the feature-major kernel."""
    def linear_init(k, fan_in, fan_out):
        kw, kb = jax.random.split(k)
        bound = 1.0 / math.sqrt(fan_in)
        w = jax.random.uniform(kw, (fan_out, fan_in), jnp.float32, -bound, bound)
        b = jax.random.uniform(kb, (fan_out, 1), jnp.float32, -bound, bound)
        return w, b

    k1, k2, k3 = jax.random.split(key, 3)
    w1, b1 = linear_init(k1, input_features, hidden_units)
    w2, b2 = linear_init(k2, hidden_units, hidden_units)
    w3, b3 = linear_init(k3, hidden_units, output_features)
    return {"w1": w1, "b1": b1, "w2": w2, "b2": b2, "w3": w3, "b3": b3}


def moon_net_ref(x, p):
    """Pure-JAX reference of the PyTorch forward (row-major)."""
    h = jnp.maximum(x @ p["w1"].T + p["b1"][:, 0], 0.0)
    h = jnp.maximum(h @ p["w2"].T + p["b2"][:, 0], 0.0)
    return h @ p["w3"].T + p["b3"][:, 0]


if __name__ == "__main__":
    # make_moons-style data: 2 input features; batch=8, hidden=8, out=2.
    batch = 8
    input_features = 2
    hidden_units = 8
    output_features = 2

    key = jax.random.PRNGKey(0)
    k_x, k_p = jax.random.split(key)
    x = jax.random.normal(k_x, (batch, input_features), jnp.float32)
    params = init_moon_net_params(k_p, input_features, output_features,
                                  hidden_units)

    out = jax.block_until_ready(moon_net_forward(x, params))
    ref = moon_net_ref(x, params)
    assert out.shape == (batch, output_features)
    assert jnp.allclose(out, ref, atol=1e-5, rtol=1e-5), (out, ref)

    # Also exercise the padded, multi-step-grid path (ragged batch, >1 tile).
    x_big = jax.random.normal(k_x, (300, input_features), jnp.float32)
    out_big = jax.block_until_ready(
        moon_net_forward(x_big, params, block_batch=128))
    ref_big = moon_net_ref(x_big, params)
    assert out_big.shape == (300, output_features)
    assert jnp.allclose(out_big, ref_big, atol=1e-5, rtol=1e-5)

    print("KERNEL_OK")
</pallas_src>

<mosaic_0001>
module attributes {stable_mosaic.version = 11 : i64} {
  func.func @_mlp_kernel(%arg0: i32, %arg1: memref<2x128xf32, #tpu.memory_space<vmem>>, %arg2: memref<8x2xf32, #tpu.memory_space<vmem>>, %arg3: memref<8x1xf32, #tpu.memory_space<vmem>>, %arg4: memref<8x8xf32, #tpu.memory_space<vmem>>, %arg5: memref<8x1xf32, #tpu.memory_space<vmem>>, %arg6: memref<2x8xf32, #tpu.memory_space<vmem>>, %arg7: memref<2x1xf32, #tpu.memory_space<vmem>>, %arg8: memref<2x128xf32, #tpu.memory_space<vmem>>) attributes {dimension_semantics = [#tpu.dimension_semantics<parallel>], iteration_bounds = array<i64: 1>, scalar_prefetch = 0 : i64, scratch_operands = 0 : i64, tpu.core_type = #tpu.core_type<tc>, window_params = [{transform_indices = @transform_0, window_bounds = array<i64: 2, 128>}, {pipeline_mode = #tpu.pipeline_mode<synchronous>, transform_indices = @transform_1, window_bounds = array<i64: 8, 2>}, {pipeline_mode = #tpu.pipeline_mode<synchronous>, transform_indices = @transform_2, window_bounds = array<i64: 8, 1>}, {pipeline_mode = #tpu.pipeline_mode<synchronous>, transform_indices = @transform_3, window_bounds = array<i64: 8, 8>}, {pipeline_mode = #tpu.pipeline_mode<synchronous>, transform_indices = @transform_4, window_bounds = array<i64: 8, 1>}, {pipeline_mode = #tpu.pipeline_mode<synchronous>, transform_indices = @transform_5, window_bounds = array<i64: 2, 8>}, {pipeline_mode = #tpu.pipeline_mode<synchronous>, transform_indices = @transform_6, window_bounds = array<i64: 2, 1>}, {transform_indices = @transform_7, window_bounds = array<i64: 2, 128>}]} {
    %c0 = arith.constant 0 : index
    %c0_0 = arith.constant 0 : index
    %0 = vector.load %arg1[%c0, %c0_0] : memref<2x128xf32, #tpu.memory_space<vmem>>, vector<2x128xf32>
    %c0_1 = arith.constant 0 : index
    %c0_2 = arith.constant 0 : index
    %1 = vector.load %arg2[%c0_1, %c0_2] : memref<8x2xf32, #tpu.memory_space<vmem>>, vector<8x2xf32>
    %2 = vector.extract_strided_slice %1 {offsets = [0, 0], sizes = [8, 1], strides = [1, 1]} : vector<8x2xf32> to vector<8x1xf32>
    %3 = vector.extract_strided_slice %0 {offsets = [0, 0], sizes = [1, 128], strides = [1, 1]} : vector<2x128xf32> to vector<1x128xf32>
    %4 = vector.broadcast %2 : vector<8x1xf32> to vector<8x128xf32>
    %5 = vector.broadcast %3 : vector<1x128xf32> to vector<8x128xf32>
    %6 = arith.mulf %4, %5 : vector<8x128xf32>
    %7 = vector.extract_strided_slice %1 {offsets = [0, 1], sizes = [8, 1], strides = [1, 1]} : vector<8x2xf32> to vector<8x1xf32>
    %8 = vector.extract_strided_slice %0 {offsets = [1, 0], sizes = [1, 128], strides = [1, 1]} : vector<2x128xf32> to vector<1x128xf32>
    %9 = vector.broadcast %7 : vector<8x1xf32> to vector<8x128xf32>
    %10 = vector.broadcast %8 : vector<1x128xf32> to vector<8x128xf32>
    %11 = arith.mulf %9, %10 : vector<8x128xf32>
    %12 = arith.addf %6, %11 : vector<8x128xf32>
    %c0_3 = arith.constant 0 : index
    %c0_4 = arith.constant 0 : index
    %13 = vector.load %arg3[%c0_3, %c0_4] : memref<8x1xf32, #tpu.memory_space<vmem>>, vector<8x1xf32>
    %14 = vector.broadcast %13 : vector<8x1xf32> to vector<8x128xf32>
    %15 = arith.addf %12, %14 : vector<8x128xf32>
    %cst = arith.constant 0.000000e+00 : f32
    %16 = vector.broadcast %cst : f32 to vector<8x128xf32>
    %17 = arith.maximumf %15, %16 : vector<8x128xf32>
    %c0_5 = arith.constant 0 : index
    %c0_6 = arith.constant 0 : index
    %18 = vector.load %arg4[%c0_5, %c0_6] : memref<8x8xf32, #tpu.memory_space<vmem>>, vector<8x8xf32>
    %19 = vector.extract_strided_slice %18 {offsets = [0, 0], sizes = [8, 1], strides = [1, 1]} : vector<8x8xf32> to vector<8x1xf32>
    %20 = vector.extract_strided_slice %17 {offsets = [0, 0], sizes = [1, 128], strides = [1, 1]} : vector<8x128xf32> to vector<1x128xf32>
    %21 = vector.broadcast %19 : vector<8x1xf32> to vector<8x128xf32>
    %22 = vector.broadcast %20 : vector<1x128xf32> to vector<8x128xf32>
    %23 = arith.mulf %21, %22 : vector<8x128xf32>
    %24 = vector.extract_strided_slice %18 {offsets = [0, 1], sizes = [8, 1], strides = [1, 1]} : vector<8x8xf32> to vector<8x1xf32>
    %25 = vector.extract_strided_slice %17 {offsets = [1, 0], sizes = [1, 128], strides = [1, 1]} : vector<8x128xf32> to vector<1x128xf32>
    %26 = vector.broadcast %24 : vector<8x1xf32> to vector<8x128xf32>
    %27 = vector.broadcast %25 : vector<1x128xf32> to vector<8x128xf32>
    %28 = arith.mulf %26, %27 : vector<8x128xf32>
    %29 = arith.addf %23, %28 : vector<8x128xf32>
    %30 = vector.extract_strided_slice %18 {offsets = [0, 2], sizes = [8, 1], strides = [1, 1]} : vector<8x8xf32> to vector<8x1xf32>
    %31 = vector.extract_strided_slice %17 {offsets = [2, 0], sizes = [1, 128], strides = [1, 1]} : vector<8x128xf32> to vector<1x128xf32>
    %32 = vector.broadcast %30 : vector<8x1xf32> to vector<8x128xf32>
    %33 = vector.broadcast %31 : vector<1x128xf32> to vector<8x128xf32>
    %34 = arith.mulf %32, %33 : vector<8x128xf32>
    %35 = arith.addf %29, %34 : vector<8x128xf32>
    %36 = vector.extract_strided_slice %18 {offsets = [0, 3], sizes = [8, 1], strides = [1, 1]} : vector<8x8xf32> to vector<8x1xf32>
    %37 = vector.extract_strided_slice %17 {offsets = [3, 0], sizes = [1, 128], strides = [1, 1]} : vector<8x128xf32> to vector<1x128xf32>
    %38 = vector.broadcast %36 : vector<8x1xf32> to vector<8x128xf32>
    %39 = vector.broadcast %37 : vector<1x128xf32> to vector<8x128xf32>
    %40 = arith.mulf %38, %39 : vector<8x128xf32>
    %41 = arith.addf %35, %40 : vector<8x128xf32>
    %42 = vector.extract_strided_slice %18 {offsets = [0, 4], sizes = [8, 1], strides = [1, 1]} : vector<8x8xf32> to vector<8x1xf32>
    %43 = vector.extract_strided_slice %17 {offsets = [4, 0], sizes = [1, 128], strides = [1, 1]} : vector<8x128xf32> to vector<1x128xf32>
    %44 = vector.broadcast %42 : vector<8x1xf32> to vector<8x128xf32>
    %45 = vector.broadcast %43 : vector<1x128xf32> to vector<8x128xf32>
    %46 = arith.mulf %44, %45 : vector<8x128xf32>
    %47 = arith.addf %41, %46 : vector<8x128xf32>
    %48 = vector.extract_strided_slice %18 {offsets = [0, 5], sizes = [8, 1], strides = [1, 1]} : vector<8x8xf32> to vector<8x1xf32>
    %49 = vector.extract_strided_slice %17 {offsets = [5, 0], sizes = [1, 128], strides = [1, 1]} : vector<8x128xf32> to vector<1x128xf32>
    %50 = vector.broadcast %48 : vector<8x1xf32> to vector<8x128xf32>
    %51 = vector.broadcast %49 : vector<1x128xf32> to vector<8x128xf32>
    %52 = arith.mulf %50, %51 : vector<8x128xf32>
    %53 = arith.addf %47, %52 : vector<8x128xf32>
    %54 = vector.extract_strided_slice %18 {offsets = [0, 6], sizes = [8, 1], strides = [1, 1]} : vector<8x8xf32> to vector<8x1xf32>
    %55 = vector.extract_strided_slice %17 {offsets = [6, 0], sizes = [1, 128], strides = [1, 1]} : vector<8x128xf32> to vector<1x128xf32>
    %56 = vector.broadcast %54 : vector<8x1xf32> to vector<8x128xf32>
    %57 = vector.broadcast %55 : vector<1x128xf32> to vector<8x128xf32>
    %58 = arith.mulf %56, %57 : vector<8x128xf32>
    %59 = arith.addf %53, %58 : vector<8x128xf32>
    %60 = vector.extract_strided_slice %18 {offsets = [0, 7], sizes = [8, 1], strides = [1, 1]} : vector<8x8xf32> to vector<8x1xf32>
    %61 = vector.extract_strided_slice %17 {offsets = [7, 0], sizes = [1, 128], strides = [1, 1]} : vector<8x128xf32> to vector<1x128xf32>
    %62 = vector.broadcast %60 : vector<8x1xf32> to vector<8x128xf32>
    %63 = vector.broadcast %61 : vector<1x128xf32> to vector<8x128xf32>
    %64 = arith.mulf %62, %63 : vector<8x128xf32>
    %65 = arith.addf %59, %64 : vector<8x128xf32>
    %c0_7 = arith.constant 0 : index
    %c0_8 = arith.constant 0 : index
    %66 = vector.load %arg5[%c0_7, %c0_8] : memref<8x1xf32, #tpu.memory_space<vmem>>, vector<8x1xf32>
    %67 = vector.broadcast %66 : vector<8x1xf32> to vector<8x128xf32>
    %68 = arith.addf %65, %67 : vector<8x128xf32>
    %cst_9 = arith.constant 0.000000e+00 : f32
    %69 = vector.broadcast %cst_9 : f32 to vector<8x128xf32>
    %70 = arith.maximumf %68, %69 : vector<8x128xf32>
    %c0_10 = arith.constant 0 : index
    %c0_11 = arith.constant 0 : index
    %71 = vector.load %arg6[%c0_10, %c0_11] : memref<2x8xf32, #tpu.memory_space<vmem>>, vector<2x8xf32>
    %72 = vector.extract_strided_slice %71 {offsets = [0, 0], sizes = [2, 1], strides = [1, 1]} : vector<2x8xf32> to vector<2x1xf32>
    %73 = vector.extract_strided_slice %70 {offsets = [0, 0], sizes = [1, 128], strides = [1, 1]} : vector<8x128xf32> to vector<1x128xf32>
    %74 = vector.broadcast %72 : vector<2x1xf32> to vector<2x128xf32>
    %75 = vector.broadcast %73 : vector<1x128xf32> to vector<2x128xf32>
    %76 = arith.mulf %74, %75 : vector<2x128xf32>
    %77 = vector.extract_strided_slice %71 {offsets = [0, 1], sizes = [2, 1], strides = [1, 1]} : vector<2x8xf32> to vector<2x1xf32>
    %78 = vector.extract_strided_slice %70 {offsets = [1, 0], sizes = [1, 128], strides = [1, 1]} : vector<8x128xf32> to vector<1x128xf32>
    %79 = vector.broadcast %77 : vector<2x1xf32> to vector<2x128xf32>
    %80 = vector.broadcast %78 : vector<1x128xf32> to vector<2x128xf32>
    %81 = arith.mulf %79, %80 : vector<2x128xf32>
    %82 = arith.addf %76, %81 : vector<2x128xf32>
    %83 = vector.extract_strided_slice %71 {offsets = [0, 2], sizes = [2, 1], strides = [1, 1]} : vector<2x8xf32> to vector<2x1xf32>
    %84 = vector.extract_strided_slice %70 {offsets = [2, 0], sizes = [1, 128], strides = [1, 1]} : vector<8x128xf32> to vector<1x128xf32>
    %85 = vector.broadcast %83 : vector<2x1xf32> to vector<2x128xf32>
    %86 = vector.broadcast %84 : vector<1x128xf32> to vector<2x128xf32>
    %87 = arith.mulf %85, %86 : vector<2x128xf32>
    %88 = arith.addf %82, %87 : vector<2x128xf32>
    %89 = vector.extract_strided_slice %71 {offsets = [0, 3], sizes = [2, 1], strides = [1, 1]} : vector<2x8xf32> to vector<2x1xf32>
    %90 = vector.extract_strided_slice %70 {offsets = [3, 0], sizes = [1, 128], strides = [1, 1]} : vector<8x128xf32> to vector<1x128xf32>
    %91 = vector.broadcast %89 : vector<2x1xf32> to vector<2x128xf32>
    %92 = vector.broadcast %90 : vector<1x128xf32> to vector<2x128xf32>
    %93 = arith.mulf %91, %92 : vector<2x128xf32>
    %94 = arith.addf %88, %93 : vector<2x128xf32>
    %95 = vector.extract_strided_slice %71 {offsets = [0, 4], sizes = [2, 1], strides = [1, 1]} : vector<2x8xf32> to vector<2x1xf32>
    %96 = vector.extract_strided_slice %70 {offsets = [4, 0], sizes = [1, 128], strides = [1, 1]} : vector<8x128xf32> to vector<1x128xf32>
    %97 = vector.broadcast %95 : vector<2x1xf32> to vector<2x128xf32>
    %98 = vector.broadcast %96 : vector<1x128xf32> to vector<2x128xf32>
    %99 = arith.mulf %97, %98 : vector<2x128xf32>
    %100 = arith.addf %94, %99 : vector<2x128xf32>
    %101 = vector.extract_strided_slice %71 {offsets = [0, 5], sizes = [2, 1], strides = [1, 1]} : vector<2x8xf32> to vector<2x1xf32>
    %102 = vector.extract_strided_slice %70 {offsets = [5, 0], sizes = [1, 128], strides = [1, 1]} : vector<8x128xf32> to vector<1x128xf32>
    %103 = vector.broadcast %101 : vector<2x1xf32> to vector<2x128xf32>
    %104 = vector.broadcast %102 : vector<1x128xf32> to vector<2x128xf32>
    %105 = arith.mulf %103, %104 : vector<2x128xf32>
    %106 = arith.addf %100, %105 : vector<2x128xf32>
    %107 = vector.extract_strided_slice %71 {offsets = [0, 6], sizes = [2, 1], strides = [1, 1]} : vector<2x8xf32> to vector<2x1xf32>
    %108 = vector.extract_strided_slice %70 {offsets = [6, 0], sizes = [1, 128], strides = [1, 1]} : vector<8x128xf32> to vector<1x128xf32>
    %109 = vector.broadcast %107 : vector<2x1xf32> to vector<2x128xf32>
    %110 = vector.broadcast %108 : vector<1x128xf32> to vector<2x128xf32>
    %111 = arith.mulf %109, %110 : vector<2x128xf32>
    %112 = arith.addf %106, %111 : vector<2x128xf32>
    %113 = vector.extract_strided_slice %71 {offsets = [0, 7], sizes = [2, 1], strides = [1, 1]} : vector<2x8xf32> to vector<2x1xf32>
    %114 = vector.extract_strided_slice %70 {offsets = [7, 0], sizes = [1, 128], strides = [1, 1]} : vector<8x128xf32> to vector<1x128xf32>
    %115 = vector.broadcast %113 : vector<2x1xf32> to vector<2x128xf32>
    %116 = vector.broadcast %114 : vector<1x128xf32> to vector<2x128xf32>
    %117 = arith.mulf %115, %116 : vector<2x128xf32>
    %118 = arith.addf %112, %117 : vector<2x128xf32>
    %c0_12 = arith.constant 0 : index
    %c0_13 = arith.constant 0 : index
    %119 = vector.load %arg7[%c0_12, %c0_13] : memref<2x1xf32, #tpu.memory_space<vmem>>, vector<2x1xf32>
    %120 = vector.broadcast %119 : vector<2x1xf32> to vector<2x128xf32>
    %121 = arith.addf %118, %120 : vector<2x128xf32>
    %c0_14 = arith.constant 0 : index
    %c0_15 = arith.constant 0 : index
    %122 = vector.load %arg8[%c0_14, %c0_15] : memref<2x128xf32, #tpu.memory_space<vmem>>, vector<2x128xf32>
    tpu.vector_store %arg8[%c0_14, %c0_15], %121 {strides = array<i32>} : memref<2x128xf32, #tpu.memory_space<vmem>>, vector<2x128xf32>,
    return
  }
  func.func @transform_0(%arg0: i32) -> (i32, i32) {
    %c0_i32 = arith.constant 0 : i32
    %c0_i32_0 = arith.constant 0 : i32
    return %c0_i32, %arg0 : i32, i32
  }
  func.func @transform_1(%arg0: i32) -> (i32, i32) {
    %c0_i32 = arith.constant 0 : i32
    %c0_i32_0 = arith.constant 0 : i32
    %c0_i32_1 = arith.constant 0 : i32
    return %c0_i32, %c0_i32_0 : i32, i32
  }
  func.func @transform_2(%arg0: i32) -> (i32, i32) {
    %c0_i32 = arith.constant 0 : i32
    %c0_i32_0 = arith.constant 0 : i32
    %c0_i32_1 = arith.constant 0 : i32
    return %c0_i32, %c0_i32_0 : i32, i32
  }
  func.func @transform_3(%arg0: i32) -> (i32, i32) {
    %c0_i32 = arith.constant 0 : i32
    %c0_i32_0 = arith.constant 0 : i32
    %c0_i32_1 = arith.constant 0 : i32
    return %c0_i32, %c0_i32_0 : i32, i32
  }
  func.func @transform_4(%arg0: i32) -> (i32, i32) {
    %c0_i32 = arith.constant 0 : i32
    %c0_i32_0 = arith.constant 0 : i32
    %c0_i32_1 = arith.constant 0 : i32
    return %c0_i32, %c0_i32_0 : i32, i32
  }
  func.func @transform_5(%arg0: i32) -> (i32, i32) {
    %c0_i32 = arith.constant 0 : i32
    %c0_i32_0 = arith.constant 0 : i32
    %c0_i32_1 = arith.constant 0 : i32
    return %c0_i32, %c0_i32_0 : i32, i32
  }
  func.func @transform_6(%arg0: i32) -> (i32, i32) {
    %c0_i32 = arith.constant 0 : i32
    %c0_i32_0 = arith.constant 0 : i32
    %c0_i32_1 = arith.constant 0 : i32
    return %c0_i32, %c0_i32_0 : i32, i32
  }
  func.func @transform_7(%arg0: i32) -> (i32, i32) {
    %c0_i32 = arith.constant 0 : i32
    %c0_i32_0 = arith.constant 0 : i32
    return %c0_i32, %arg0 : i32, i32
  }
}

</mosaic_0001>

<llo_original>
// kernel: tpu_custom_call.1
$region0: #{tpu_custom_call.1}
  #allocation0 [shape = 'u32[]', space=smem, size = 0x4, offset = 0x4, fixed_abs, tag = 'smem constant byte address 0x4 - core index']
  #allocation1 [shape = 'u32[72,128]{1,0:T(1,128)}', space=vmem, size = 0x9000, scoped, tag = 'internal scratch']
  %s0 = inlined_call_operand.vmem [shape: f32[2,128], index: 0, kind: input, shape index: {}]
  %s1 = inlined_call_operand.vmem [shape: f32[8,2], index: 1, kind: input, shape index: {}]
  %s2 = inlined_call_operand.vmem [shape: f32[8,1], index: 2, kind: input, shape index: {}]
  %s3 = inlined_call_operand.vmem [shape: f32[8,8], index: 3, kind: input, shape index: {}]
  %s4 = inlined_call_operand.vmem [shape: f32[8,1], index: 4, kind: input, shape index: {}]
  %s5 = inlined_call_operand.vmem [shape: f32[2,8], index: 5, kind: input, shape index: {}]
  %s6 = inlined_call_operand.vmem [shape: f32[2,1], index: 6, kind: input, shape index: {}]
  %s7 = inlined_call_operand.hbm [shape: f32[2,128], index: 7, kind: output, shape index: {}]
  %s8 = sld [smem:[#allocation0]]
  $region38: #{tpu_custom_call.1} parent=0
    _
  %s10 = ssub.s32 1, %s8
  %s11 = scalar_select 0, %s10, %s8
  $region1: #{tpu_custom_call.1} parent=0
    #allocation2 [shape = 'u8[1024]{0}', space=vmem, size = 0x400, scoped, tag = 'output window, operand 0, single buffered']
    #allocation3 [shape = 's32[1]{0}', space=sflag, size = 0x4, scoped, tag = 'scoped memory for tpu_custom_call.1']
    %12 = vsyncpa [#allocation3], 0
    // Predicated region
    $region2: #{tpu_custom_call.1} parent=1 // pred_check
      _
    $region3: #{tpu_custom_call.1} parent=1 // pred_check_branch
      %14 = sbr.rel (0) target = $region5
    $region4: #{tpu_custom_call.1} parent=1 // pred_region
      _
    $region5: #{tpu_custom_call.1} parent=1 // pred_fallthru
      _
    // Predicated region
    $region6: #{tpu_custom_call.1} parent=1 // pred_check
      _
    $region7: #{tpu_custom_call.1} parent=1 // pred_check_branch
      %16 = sbr.rel (0) target = $region9
    $region8: #{tpu_custom_call.1} parent=1 // pred_region
      _
    $region9: #{tpu_custom_call.1} parent=1 // pred_fallthru
      _
    // Predicated region
    $region10: #{tpu_custom_call.1} parent=1 // pred_check
      _
    $region11: #{tpu_custom_call.1} parent=1 // pred_check_branch
      %18 = sbr.rel (0) target = $region13
    $region12: #{tpu_custom_call.1} parent=1 // pred_region
      _
    $region13: #{tpu_custom_call.1} parent=1 // pred_fallthru
      _
    // Predicated region
    $region14: #{tpu_custom_call.1} parent=1 // pred_check
      _
    $region15: #{tpu_custom_call.1} parent=1 // pred_check_branch
      %20 = sbr.rel (0) target = $region17
    $region16: #{tpu_custom_call.1} parent=1 // pred_region
      _
    $region17: #{tpu_custom_call.1} parent=1 // pred_fallthru
      _
    // Predicated region
    $region18: #{tpu_custom_call.1} parent=1 // pred_check
      _
    $region19: #{tpu_custom_call.1} parent=1 // pred_check_branch
      %22 = sbr.rel (0) target = $region21
    $region20: #{tpu_custom_call.1} parent=1 // pred_region
      _
    $region21: #{tpu_custom_call.1} parent=1 // pred_fallthru
      _
    // Predicated region
    $region22: #{tpu_custom_call.1} parent=1 // pred_check
      _
    $region23: #{tpu_custom_call.1} parent=1 // pred_check_branch
      %24 = sbr.rel (0) target = $region25
    $region24: #{tpu_custom_call.1} parent=1 // pred_region
      _
    $region25: #{tpu_custom_call.1} parent=1 // pred_fallthru
      _
    // Predicated region
    $region26: #{tpu_custom_call.1} parent=1 // pred_check
      _
    $region27: #{tpu_custom_call.1} parent=1 // pred_check_branch
      %26 = sbr.rel (0) target = $region29
    $region28: #{tpu_custom_call.1} parent=1 // pred_region
      _
    $region29: #{tpu_custom_call.1} parent=1 // pred_fallthru
      _
    %v27 = vld [vmem:[%s0] sm:$0x3]
    %v28 = vld [vmem:[%s1] sm:$0xff]
    %30 = vset.pattern.permute.xlu0 0
    %31 = vperm.xlu0 %30, %v28
    %v32 = vpop.permute.xlu0 %31
    %v34 = vperm.slane %v27, 0
    %v35 = vmul.f32 %v32, %v34
    %36 = vset.pattern.permute.xlu0 1
    %37 = vperm.xlu0 %36, %v28
    %v38 = vpop.permute.xlu0 %37
    %v40 = vperm.slane %v27, 1
    %v41 = vmul.f32 %v38, %v40
    %v42 = vadd.f32 %v35, %v41
    %v43 = vld [vmem:[%s2] sm:$0xff]
    %45 = vset.pattern.permute.xlu0 0
    %46 = vperm.xlu0 %45, %v43
    %v47 = vpop.permute.xlu0 %46
    %v49 = vadd.f32 %v42, %v47
    %v50 = vmax.f32 %v49, 0.0
    %v51 = vld [vmem:[%s3] sm:$0xff]
    %53 = vset.pattern.permute.xlu0 0
    %54 = vperm.xlu0 %53, %v51
    %v55 = vpop.permute.xlu0 %54
    %v57 = vperm.slane %v50, 0
    %v58 = vmul.f32 %v55, %v57
    %59 = vset.pattern.permute.xlu0 1
    %60 = vperm.xlu0 %59, %v51
    %v61 = vpop.permute.xlu0 %60
    %v63 = vperm.slane %v50, 1
    %v64 = vmul.f32 %v61, %v63
    %v65 = vadd.f32 %v58, %v64
    %66 = vset.pattern.permute.xlu0 2
    %67 = vperm.xlu0 %66, %v51
    %v68 = vpop.permute.xlu0 %67
    %v70 = vperm.slane %v50, 2
    %v71 = vmul.f32 %v68, %v70
    %v72 = vadd.f32 %v65, %v71
    %73 = vset.pattern.permute.xlu0 3
    %74 = vperm.xlu0 %73, %v51
    %v75 = vpop.permute.xlu0 %74
    %v77 = vperm.slane %v50, 3
    %v78 = vmul.f32 %v75, %v77
    %v79 = vadd.f32 %v72, %v78
    %80 = vset.pattern.permute.xlu0 4
    %81 = vperm.xlu0 %80, %v51
    %v82 = vpop.permute.xlu0 %81
    %v84 = vperm.slane %v50, 4
    %v85 = vmul.f32 %v82, %v84
    %v86 = vadd.f32 %v79, %v85
    %87 = vset.pattern.permute.xlu0 5
    %88 = vperm.xlu0 %87, %v51
    %v89 = vpop.permute.xlu0 %88
    %v91 = vperm.slane %v50, 5
    %v92 = vmul.f32 %v89, %v91
    %v93 = vadd.f32 %v86, %v92
    %94 = vset.pattern.permute.xlu0 6
    %95 = vperm.xlu0 %94, %v51
    %v96 = vpop.permute.xlu0 %95
    %v98 = vperm.slane %v50, 6
    %v99 = vmul.f32 %v96, %v98
    %v100 = vadd.f32 %v93, %v99
    %101 = vset.pattern.permute.xlu0 7
    %102 = vperm.xlu0 %101, %v51
    %v103 = vpop.permute.xlu0 %102
    %v105 = vperm.slane %v50, 7
    %v106 = vmul.f32 %v103, %v105
    %v107 = vadd.f32 %v100, %v106
    %v108 = vld [vmem:[%s4] sm:$0xff]
    %110 = vset.pattern.permute.xlu0 0
    %111 = vperm.xlu0 %110, %v108
    %v112 = vpop.permute.xlu0 %111
    %v114 = vadd.f32 %v107, %v112
    %v115 = vmax.f32 %v114, 0.0
    %v116 = vld [vmem:[%s5] sm:$0x3]
    %118 = vset.pattern.permute.xlu0 0
    %119 = vperm.xlu0 %118, %v116
    %v120 = vpop.permute.xlu0 %119
    %v122 = vperm.slane %v115, 0
    %v123 = vmul.f32 %v120, %v122
    %124 = vset.pattern.permute.xlu0 1
    %125 = vperm.xlu0 %124, %v116
    %v126 = vpop.permute.xlu0 %125
    %v128 = vperm.slane %v115, 1
    %v129 = vmul.f32 %v126, %v128
    %v130 = vadd.f32 %v123, %v129
    %131 = vset.pattern.permute.xlu0 2
    %132 = vperm.xlu0 %131, %v116
    %v133 = vpop.permute.xlu0 %132
    %v135 = vperm.slane %v115, 2
    %v136 = vmul.f32 %v133, %v135
    %v137 = vadd.f32 %v130, %v136
    %138 = vset.pattern.permute.xlu0 3
    %139 = vperm.xlu0 %138, %v116
    %v140 = vpop.permute.xlu0 %139
    %v142 = vperm.slane %v115, 3
    %v143 = vmul.f32 %v140, %v142
    %v144 = vadd.f32 %v137, %v143
    %145 = vset.pattern.permute.xlu0 4
    %146 = vperm.xlu0 %145, %v116
    %v147 = vpop.permute.xlu0 %146
    %v149 = vperm.slane %v115, 4
    %v150 = vmul.f32 %v147, %v149
    %v151 = vadd.f32 %v144, %v150
    %152 = vset.pattern.permute.xlu0 5
    %153 = vperm.xlu0 %152, %v116
    %v154 = vpop.permute.xlu0 %153
    %v156 = vperm.slane %v115, 5
    %v157 = vmul.f32 %v154, %v156
    %v158 = vadd.f32 %v151, %v157
    %159 = vset.pattern.permute.xlu0 6
    %160 = vperm.xlu0 %159, %v116
    %v161 = vpop.permute.xlu0 %160
    %v163 = vperm.slane %v115, 6
    %v164 = vmul.f32 %v161, %v163
    %v165 = vadd.f32 %v158, %v164
    %166 = vset.pattern.permute.xlu0 7
    %167 = vperm.xlu0 %166, %v116
    %v168 = vpop.permute.xlu0 %167
    %v170 = vperm.slane %v115, 7
    %v171 = vmul.f32 %v168, %v170
    %v172 = vadd.f32 %v165, %v171
    %v173 = vld [vmem:[%s6] sm:$0x3]
    %175 = vset.pattern.permute.xlu0 0
    %176 = vperm.xlu0 %175, %v173
    %v177 = vpop.permute.xlu0 %176
    %v179 = vadd.f32 %v172, %v177
    %180 = vst [vmem:[#allocation2] sm:$0x3] %v179
    // Predicated region
    $region30: #{tpu_custom_call.1} parent=1 // pred_check
      _
    $region31: #{tpu_custom_call.1} parent=1 // pred_check_branch
      %182 = sbr.rel (0) target = $region33
    $region32: #{tpu_custom_call.1} parent=1 // pred_region
      %184 = vsyncadd [#allocation3], 0
      %s186 = sshll.u32 [#allocation2], 4
      %s187 = int_to_ptr.vmem [resolvable:$true] %s186
      %s188 = sshll.u32 %s7, 4
      %s189 = int_to_ptr.hbm [resolvable:$true] %s188
      %191 = dma.vmem_to_hbm [thread:$0]  %s187, 32, %s189, [#allocation3]
    $region33: #{tpu_custom_call.1} parent=1 // pred_fallthru
      _
    // Predicated region
    $region34: #{tpu_custom_call.1} parent=1 // pred_check
      _
    $region35: #{tpu_custom_call.1} parent=1 // pred_check_branch
      %193 = sbr.rel (0) target = $region37
    $region36: #{tpu_custom_call.1} parent=1 // pred_region
      %195 = dma.done [#allocation3], 32
    $region37: #{tpu_custom_call.1} parent=1 // pred_fallthru
      _
    %196 = vsyncpa [#allocation3], 1

</llo_original>
